<compile_context>
chip_gen: v5e
topology: v5e:2x2
jax: 0.10.0
libtpu: 0.0.40
codegen_flags: <defaults>
</compile_context>

<pallas_src>
import functools

import jax
import jax.numpy as jnp
from jax.experimental import pallas as pl
from jax.experimental.pallas import tpu as pltpu


def _ds(start, size, step):
    # pl.ds with optional stride (avoid passing stride=1 explicitly).
    return pl.ds(start, size) if step == 1 else pl.ds(start, size, step)


def _round_up(v, m):
    return (v + m - 1) // m * m


def _vmem_capacity_bytes():
    """Physical VMEM capacity of the local TPU generation (64 MiB fallback)."""
    try:
        cap = int(getattr(pltpu.get_tpu_info(), "vmem_capacity_bytes"))
        if cap > 0:
            return cap
    except Exception:
        pass
    return 64 * 1024 * 1024  # conservative (v7x per-TensorCore)


def _maxpool_kernel(x_ref, o_ref, *scratch_refs, ksize, stride, padding,
                    h, w, h_out, w_out, hoff, woff, neg):
    """x_ref: (B, H, W) block; o_ref: (B, H_out, W_out) block.

    scratch (order): [hpad (only if padding > 0)], wpad
      hpad: (B, hoff + H + padding, W)      -- H padded with `neg`
      wpad: (B, woff + W + padding, H_out)  -- W padded with `neg`
    Data is stored at a dtype-tile-aligned sublane offset (hoff / woff); the
    conceptual padded index 0 sits at scratch row off - padding.
    """
    dt = x_ref.dtype

    si = 0
    if padding > 0:
        hpad_ref = scratch_refs[si]
        si += 1
    wpad_ref = scratch_refs[si]

    # ---------- pass 1: reduce over kh (H lives on the sublane axis) --------
    if padding > 0:
        hbase = hoff - padding
        pad_rows = jnp.full((hpad_ref.shape[0], padding, w), neg, dt)
        hpad_ref[:, hbase:hoff, :] = pad_rows                       # top pad
        hpad_ref[:, hoff + h:hoff + h + padding, :] = pad_rows      # bottom pad
        hpad_ref[:, hoff:hoff + h, :] = x_ref[...]                  # aligned bulk store
        src, start = hpad_ref, hbase
    else:
        src, start = x_ref, 0                                       # no scratch needed

    acc = None
    for kh in range(ksize):
        tap = src[:, _ds(start + kh, h_out, stride), :]             # (B, h_out, w)
        acc = tap if acc is None else jnp.maximum(acc, tap)

    # ---------- pass 2: reduce over kw (move W onto sublanes via the XLU) ---
    wbase = woff - padding
    if padding > 0:
        pad_rows2 = jnp.full((wpad_ref.shape[0], padding, h_out), neg, dt)
        wpad_ref[:, wbase:woff, :] = pad_rows2                      # left pad
        wpad_ref[:, woff + w:woff + w + padding, :] = pad_rows2     # right pad
    wpad_ref[:, woff:woff + w, :] = jnp.swapaxes(acc, 1, 2)         # (B, w, h_out)

    out = None
    for kw in range(ksize):
        tap = wpad_ref[:, _ds(wbase + kw, w_out, stride), :]        # (B, w_out, h_out)
        out = tap if out is None else jnp.maximum(out, tap)

    o_ref[...] = jnp.swapaxes(out, 1, 2).astype(o_ref.dtype)


def max_pool2d(x, kernel_size: int, stride=None, padding: int = 1):
    """Equivalent of torch.max_pool2d(x, kernel_size, stride, padding) for NCHW."""
    if stride is None:
        stride = kernel_size
    n, c, h, w = x.shape
    h_out = (h + 2 * padding - kernel_size) // stride + 1
    w_out = (w + 2 * padding - kernel_size) // stride + 1
    nc = n * c

    if jnp.issubdtype(x.dtype, jnp.floating):
        neg = float("-inf")
    else:
        neg = int(jnp.iinfo(x.dtype).min)

    # Free view: merge N and C.  No transpose, no HBM padding.
    xr = x.reshape(nc, h, w)

    itemsize = jnp.dtype(x.dtype).itemsize
    sub = max(8, 32 // itemsize)                 # dtype-aware sublane tile
    hoff = _round_up(padding, sub) if padding > 0 else 0
    woff = hoff

    def tile_bytes(rows, cols):
        return itemsize * _round_up(max(rows, 1), sub) * _round_up(max(cols, 1), 128)

    # Per-(N*C)-slice VMEM working set: double-buffered in/out blocks plus
    # the single-buffered scratch buffers (padded to hardware tiles).
    per_slice = 2 * tile_bytes(h, w) + 2 * tile_bytes(h_out, w_out)
    if padding > 0:
        per_slice += tile_bytes(hoff + h + padding, w)
    per_slice += tile_bytes(woff + w + padding, h_out)

    vmem_cap = _vmem_capacity_bytes()
    ws_budget = (vmem_cap * 5) // 8              # ~40 MiB on v7x, ~80 MiB on v5e/v6e
    block_budget = max(1, ws_budget // max(per_slice, 1))

    # Keep the grid at >= 4 steps when N*C allows it so v7x's two TensorCores
    # both get work and the input/output DMA pipeline has iterations to overlap.
    min_steps = min(nc, 4)
    block_nc = max(1, min(block_budget, -(-nc // min_steps)))
    grid_len = pl.cdiv(nc, block_nc)

    ws_actual = block_nc * per_slice
    vmem_limit = max(32 << 20, ws_actual + (8 << 20))
    vmem_limit = int(min(vmem_limit, vmem_cap - (4 << 20)))

    kernel = functools.partial(
        _maxpool_kernel, ksize=kernel_size, stride=stride, padding=padding,
        h=h, w=w, h_out=h_out, w_out=w_out, hoff=hoff, woff=woff, neg=neg)

    scratch_shapes = []
    if padding > 0:
        scratch_shapes.append(pltpu.VMEM((block_nc, hoff + h + padding, w), x.dtype))
    scratch_shapes.append(pltpu.VMEM((block_nc, woff + w + padding, h_out), x.dtype))

    cost = pl.CostEstimate(
        flops=int(kernel_size * nc * h_out * (w + w_out)),
        transcendentals=0,
        bytes_accessed=int(itemsize * nc * (h * w + h_out * w_out)))

    out = pl.pallas_call(
        kernel,
        out_shape=jax.ShapeDtypeStruct((nc, h_out, w_out), x.dtype),
        grid=(grid_len,),
        in_specs=[pl.BlockSpec((block_nc, h, w), lambda g: (g, 0, 0))],
        out_specs=pl.BlockSpec((block_nc, h_out, w_out), lambda g: (g, 0, 0)),
        scratch_shapes=scratch_shapes,
        compiler_params=pltpu.CompilerParams(
            dimension_semantics=("parallel",),
            vmem_limit_bytes=vmem_limit),
        cost_estimate=cost,
    )(xr)

    # (N*C, H_out, W_out) -> NCHW: again a free reshape (no transpose).
    return out.reshape(n, c, h_out, w_out)


class MaxPool2d:
    """Mirror of the PyTorch module: __init__(kernel_size, stride=None, padding=1)."""

    def __init__(self, kernel_size: int, stride=None, padding: int = 1):
        self.kernel_size = kernel_size
        self.stride = stride
        self.padding = padding

    def __call__(self, x):
        return max_pool2d(x, self.kernel_size, self.stride, self.padding)

    def extra_repr(self) -> str:
        return (f"kernel_size={self.kernel_size}, stride={self.stride}, "
                f"padding={self.padding}")


if __name__ == "__main__":
    key = jax.random.PRNGKey(0)
    x = jax.random.normal(key, (2, 4, 16, 16), dtype=jnp.float32)

    # Module default: kernel_size=2, stride=None (-> 2), padding=1.
    pool = MaxPool2d(kernel_size=2, stride=None, padding=1)
    out = jax.block_until_ready(pool(x))
    ref = jax.lax.reduce_window(
        x, -jnp.inf, jax.lax.max,
        window_dimensions=(1, 1, 2, 2), window_strides=(1, 1, 2, 2),
        padding=((0, 0), (0, 0), (1, 1), (1, 1)))
    assert out.shape == (2, 4, 9, 9), out.shape
    assert jnp.allclose(out, ref), "mismatch vs reduce_window (k=2, s=2, p=1)"

    # Overlapping-window config exercises the stride-1 / separable path.
    out2 = jax.block_until_ready(max_pool2d(x, kernel_size=3, stride=1, padding=1))
    ref2 = jax.lax.reduce_window(
        x, -jnp.inf, jax.lax.max,
        window_dimensions=(1, 1, 3, 3), window_strides=(1, 1, 1, 1),
        padding=((0, 0), (0, 0), (1, 1), (1, 1)))
    assert out2.shape == (2, 4, 16, 16), out2.shape
    assert jnp.allclose(out2, ref2), "mismatch vs reduce_window (k=3, s=1, p=1)"

    # padding == 0 exercises the scratch-free kh path.
    out3 = jax.block_until_ready(max_pool2d(x, kernel_size=2, stride=2, padding=0))
    ref3 = jax.lax.reduce_window(
        x, -jnp.inf, jax.lax.max,
        window_dimensions=(1, 1, 2, 2), window_strides=(1, 1, 2, 2),
        padding=((0, 0), (0, 0), (0, 0), (0, 0)))
    assert out3.shape == (2, 4, 8, 8), out3.shape
    assert jnp.allclose(out3, ref3), "mismatch vs reduce_window (k=2, s=2, p=0)"

    print("KERNEL_OK")
</pallas_src>

<mosaic_0001>
module attributes {stable_mosaic.version = 11 : i64} {
  func.func @_maxpool_kernel(%arg0: i32, %arg1: memref<2x16x16xf32, #tpu.memory_space<vmem>>, %arg2: memref<2x9x9xf32, #tpu.memory_space<vmem>>, %arg3: memref<2x25x16xf32, #tpu.memory_space<vmem>>, %arg4: memref<2x25x9xf32, #tpu.memory_space<vmem>>) attributes {dimension_semantics = [#tpu.dimension_semantics<parallel>], iteration_bounds = array<i64: 4>, scalar_prefetch = 0 : i64, scratch_operands = 2 : i64, tpu.core_type = #tpu.core_type<tc>, window_params = [{transform_indices = @transform_0, window_bounds = array<i64: 2, 16, 16>}, {transform_indices = @transform_1, window_bounds = array<i64: 2, 9, 9>}]} {
    %cst = arith.constant 0xFF800000 : f32
    %0 = vector.broadcast %cst : f32 to vector<2x1x16xf32>
    %c0 = arith.constant 0 : index
    %c7 = arith.constant 7 : index
    %c0_0 = arith.constant 0 : index
    %1 = vector.load %arg3[%c0, %c7, %c0_0] : memref<2x25x16xf32, #tpu.memory_space<vmem>>, vector<2x1x16xf32>
    tpu.vector_store %arg3[%c0, %c7, %c0_0], %0 {strides = array<i32>} : memref<2x25x16xf32, #tpu.memory_space<vmem>>, vector<2x1x16xf32>,
    %c0_1 = arith.constant 0 : index
    %c24 = arith.constant 24 : index
    %c0_2 = arith.constant 0 : index
    %2 = vector.load %arg3[%c0_1, %c24, %c0_2] : memref<2x25x16xf32, #tpu.memory_space<vmem>>, vector<2x1x16xf32>
    tpu.vector_store %arg3[%c0_1, %c24, %c0_2], %0 {strides = array<i32>} : memref<2x25x16xf32, #tpu.memory_space<vmem>>, vector<2x1x16xf32>,
    %c0_3 = arith.constant 0 : index
    %c0_4 = arith.constant 0 : index
    %c0_5 = arith.constant 0 : index
    %3 = vector.load %arg1[%c0_3, %c0_4, %c0_5] : memref<2x16x16xf32, #tpu.memory_space<vmem>>, vector<2x16x16xf32>
    %c0_6 = arith.constant 0 : index
    %c8 = arith.constant 8 : index
    %c0_7 = arith.constant 0 : index
    %4 = vector.load %arg3[%c0_6, %c8, %c0_7] : memref<2x25x16xf32, #tpu.memory_space<vmem>>, vector<2x16x16xf32>
    tpu.vector_store %arg3[%c0_6, %c8, %c0_7], %3 {strides = array<i32>} : memref<2x25x16xf32, #tpu.memory_space<vmem>>, vector<2x16x16xf32>,
    %c0_8 = arith.constant 0 : index
    %c7_9 = arith.constant 7 : index
    %c0_10 = arith.constant 0 : index
    %5 = tpu.strided_load %arg3[%c0_8, %c7_9, %c0_10] {strides = array<i32: 1, 2, 1>} : memref<2x25x16xf32, #tpu.memory_space<vmem>>, vector<2x9x16xf32>
    %c0_11 = arith.constant 0 : index
    %c8_12 = arith.constant 8 : index
    %c0_13 = arith.constant 0 : index
    %6 = tpu.strided_load %arg3[%c0_11, %c8_12, %c0_13] {strides = array<i32: 1, 2, 1>} : memref<2x25x16xf32, #tpu.memory_space<vmem>>, vector<2x9x16xf32>
    %7 = arith.maximumf %5, %6 : vector<2x9x16xf32>
    %cst_14 = arith.constant 0xFF800000 : f32
    %8 = vector.broadcast %cst_14 : f32 to vector<2x1x9xf32>
    %c0_15 = arith.constant 0 : index
    %c7_16 = arith.constant 7 : index
    %c0_17 = arith.constant 0 : index
    %9 = vector.load %arg4[%c0_15, %c7_16, %c0_17] : memref<2x25x9xf32, #tpu.memory_space<vmem>>, vector<2x1x9xf32>
    tpu.vector_store %arg4[%c0_15, %c7_16, %c0_17], %8 {strides = array<i32>} : memref<2x25x9xf32, #tpu.memory_space<vmem>>, vector<2x1x9xf32>,
    %c0_18 = arith.constant 0 : index
    %c24_19 = arith.constant 24 : index
    %c0_20 = arith.constant 0 : index
    %10 = vector.load %arg4[%c0_18, %c24_19, %c0_20] : memref<2x25x9xf32, #tpu.memory_space<vmem>>, vector<2x1x9xf32>
    tpu.vector_store %arg4[%c0_18, %c24_19, %c0_20], %8 {strides = array<i32>} : memref<2x25x9xf32, #tpu.memory_space<vmem>>, vector<2x1x9xf32>,
    %11 = tpu.transpose %7, [0, 2, 1] : vector<2x9x16xf32> -> vector<2x16x9xf32>
    %c0_21 = arith.constant 0 : index
    %c8_22 = arith.constant 8 : index
    %c0_23 = arith.constant 0 : index
    %12 = vector.load %arg4[%c0_21, %c8_22, %c0_23] : memref<2x25x9xf32, #tpu.memory_space<vmem>>, vector<2x16x9xf32>
    tpu.vector_store %arg4[%c0_21, %c8_22, %c0_23], %11 {strides = array<i32>} : memref<2x25x9xf32, #tpu.memory_space<vmem>>, vector<2x16x9xf32>,
    %c0_24 = arith.constant 0 : index
    %c7_25 = arith.constant 7 : index
    %c0_26 = arith.constant 0 : index
    %13 = tpu.strided_load %arg4[%c0_24, %c7_25, %c0_26] {strides = array<i32: 1, 2, 1>} : memref<2x25x9xf32, #tpu.memory_space<vmem>>, vector<2x9x9xf32>
    %c0_27 = arith.constant 0 : index
    %c8_28 = arith.constant 8 : index
    %c0_29 = arith.constant 0 : index
    %14 = tpu.strided_load %arg4[%c0_27, %c8_28, %c0_29] {strides = array<i32: 1, 2, 1>} : memref<2x25x9xf32, #tpu.memory_space<vmem>>, vector<2x9x9xf32>
    %15 = arith.maximumf %13, %14 : vector<2x9x9xf32>
    %16 = tpu.transpose %15, [0, 2, 1] : vector<2x9x9xf32> -> vector<2x9x9xf32>
    %c0_30 = arith.constant 0 : index
    %c0_31 = arith.constant 0 : index
    %c0_32 = arith.constant 0 : index
    %17 = vector.load %arg2[%c0_30, %c0_31, %c0_32] : memref<2x9x9xf32, #tpu.memory_space<vmem>>, vector<2x9x9xf32>
    tpu.vector_store %arg2[%c0_30, %c0_31, %c0_32], %16 {strides = array<i32>} : memref<2x9x9xf32, #tpu.memory_space<vmem>>, vector<2x9x9xf32>,
    return
  }
  func.func @transform_0(%arg0: i32) -> (i32, i32, i32) {
    %c0_i32 = arith.constant 0 : i32
    %c0_i32_0 = arith.constant 0 : i32
    %c0_i32_1 = arith.constant 0 : i32
    return %arg0, %c0_i32, %c0_i32_0 : i32, i32, i32
  }
  func.func @transform_1(%arg0: i32) -> (i32, i32, i32) {
    %c0_i32 = arith.constant 0 : i32
    %c0_i32_0 = arith.constant 0 : i32
    %c0_i32_1 = arith.constant 0 : i32
    return %arg0, %c0_i32, %c0_i32_0 : i32, i32, i32
  }
}

</mosaic_0001>

<llo_original>
// kernel: tpu_custom_call.1
$region0: #{tpu_custom_call.1}
  #allocation0 [shape = 'u32[]', space=smem, size = 0x4, offset = 0x4, fixed_abs, tag = 'smem constant byte address 0x4 - core index']
  #allocation1 [shape = 'u32[72,128]{1,0:T(1,128)}', space=vmem, size = 0x9000, scoped, tag = 'internal scratch']
  #allocation2 [shape = 'f32[2,25,16]{2,1,0:T(8,128)}', space=vmem, size = 0x8000, scoped, tag = 'scratch operand']
  #allocation3 [shape = 'f32[2,25,9]{2,1,0:T(8,128)}', space=vmem, size = 0x8000, scoped, tag = 'scratch operand']
  %s0 = inlined_call_operand.hbm [shape: f32[8,16,16], index: 0, kind: input, shape index: {}]
  %s1 = inlined_call_operand.vmem [shape: f32[8,9,9], index: 1, kind: output, shape index: {}]
  %s2 = sld [smem:[#allocation0]]
  $region41: #{tpu_custom_call.1} parent=0
    _
  %s4 = ssub.s32 1, %s2
  %s5 = scalar_select 0, %s4, %s2
  $region1: #{tpu_custom_call.1} parent=0
    #allocation4 [shape = 'u8[32768]{0}', space=vmem, size = 0x8000, scoped, tag = 'input window, operand 0']
    #allocation5 [shape = 's32[2]{0}', space=sflag, size = 0x8, scoped, tag = 'scoped memory for tpu_custom_call.1']
    %6 = vsyncpa [#allocation5], 0
    %s7 = scalar_lea.sflag [#allocation5], 1
    %8 = vsyncpa %s7, 0
    loop: start=0, step=1, limit=6
    $region2: #{tpu_custom_call.1} parent=1 // loop_pre_header
      _
    $region3: #{tpu_custom_call.1} parent=1 // loop_header
      %s10 = sphi 0, %s14
      %p11 = scmp.ge.s32.totalorder %s10, 6
      %s20 = sphi 0, %s22
      %s23 = sphi 0, %s20
      %s24 = sphi 0, %s23
      %s40 = sphi 0, %s24
      %s46 = sphi 0, %s48
      %s49 = sphi 0, %s46
      %s50 = sphi 0, %s49
      %s66 = sphi 0, %s50
    $region4: #{tpu_custom_call.1} parent=1 // loop_header_branch
      %13 = sbr.rel (%p11) target = $region8
    $region5: #{tpu_custom_call.1} parent=1 // loop_body
      %s15 = ssub.s32 %s10, 1
      %s16 = ssub.s32 %s10, 2
      %s17 = sadd.s32 %s10, 1
      %s18 = ssub.s32 %s10, %s17
      %p19 = scmp.eq.s32.totalorder %s18, 0
      %s21 = sadd.s32 %s20, 1
      %s22 = scalar_select %p19, %s20, %s21
      %p25 = pneg %p19
      %p26 = scmp.eq.s32.totalorder %s10, 3
      %p27 = por %p25, %p26
      %p28 = scmp.ne.s32.totalorder %s20, %s23
      %p29 = scmp.eq.s32.totalorder %s10, 0
      %p30 = por %p28, %p29
      %p31 = scmp.ne.s32.totalorder %s20, %s23
      %p32 = scmp.eq.s32.totalorder %s15, 3
      %p33 = por %p31, %p32
      %p34 = scmp.ne.s32.totalorder %s23, %s24
      %p35 = scmp.eq.s32.totalorder %s15, 0
      %p36 = por %p34, %p35
      %p37 = scmp.ne.s32.totalorder %s23, %s24
      %p38 = scmp.eq.s32.totalorder %s16, 3
      %p39 = por %p37, %p38
      %p41 = scmp.ne.s32.totalorder %s24, %s40
      %p42 = scmp.eq.s32.totalorder %s16, 0
      %p43 = por %p41, %p42
      %s44 = ssub.s32 %s10, %s17
      %p45 = scmp.eq.s32.totalorder %s44, 0
      %s47 = sadd.s32 %s46, 1
      %s48 = scalar_select %p45, %s46, %s47
      %p51 = pneg %p45
      %p52 = scmp.eq.s32.totalorder %s10, 3
      %p53 = por %p51, %p52
      %p54 = scmp.ne.s32.totalorder %s46, %s49
      %p55 = scmp.eq.s32.totalorder %s10, 0
      %p56 = por %p54, %p55
      %p57 = scmp.ne.s32.totalorder %s46, %s49
      %p58 = scmp.eq.s32.totalorder %s15, 3
      %p59 = por %p57, %p58
      %p60 = scmp.ne.s32.totalorder %s49, %s50
      %p61 = scmp.eq.s32.totalorder %s15, 0
      %p62 = por %p60, %p61
      %p63 = scmp.ne.s32.totalorder %s49, %s50
      %p64 = scmp.eq.s32.totalorder %s16, 3
      %p65 = por %p63, %p64
      %p67 = scmp.ne.s32.totalorder %s50, %s66
      %p68 = scmp.eq.s32.totalorder %s16, 0
      %p69 = por %p67, %p68
      %p70 = scmp.le.s32.totalorder 1, %s10
      %p71 = scmp.lt.s32.totalorder %s10, 5
      %p72 = pnand %p70, %p71
      %p73 = pneg %p72
      // Predicated region
      $region9: #{tpu_custom_call.1} parent=5 // pred_check
        _
      $region10: #{tpu_custom_call.1} parent=5 // pred_check_branch
        %75 = sbr.rel (%p72) target = $region12
      $region11: #{tpu_custom_call.1} parent=5 // pred_region
        %s76 = ssub.s32 %s10, 1
      $region12: #{tpu_custom_call.1} parent=5 // pred_fallthru
        _
      %p77 = scmp.lt.s32.totalorder %s10, 4
      // Predicated region
      $region13: #{tpu_custom_call.1} parent=5 // pred_check
        %p78 = pneg %p77
      $region14: #{tpu_custom_call.1} parent=5 // pred_check_branch
        %80 = sbr.rel (%p78) target = $region16
      $region15: #{tpu_custom_call.1} parent=5 // pred_region
        // Predicated region
        $region17: #{tpu_custom_call.1} parent=15 // pred_check
          %p81 = pneg %p30
        $region18: #{tpu_custom_call.1} parent=15 // pred_check_branch
          %83 = sbr.rel (%p81) target = $region20
        $region19: #{tpu_custom_call.1} parent=15 // pred_region
          %s84 = sand.u32 %s20, 1
          %s85 = scalar_lea.sflag [#allocation5], %s84
          %s86 = sand.u32 %s20, 1
          %s87 = smul.addr %s86, 32
          %s88 = scalar_lea.vmem [#allocation4], %s87
          %s89 = smul.u32 2, %s10
          %91 = vsyncadd %s85, 0
          %s92 = smul.addr %s89, 2
          %s93 = smul.addr %s92, 8
          %s94 = scalar_lea.hbm %s0, %s93
          %s95 = sshll.u32 %s94, 4
          %s96 = int_to_ptr.hbm [resolvable:$true] %s95
          %s97 = sshll.u32 %s88, 4
          %s98 = int_to_ptr.vmem [resolvable:$true] %s97
          %103 = dma.hbm_to_vmem [thread:$0]  %s96, 512, %s98, %s85, 128, 128, 8
        $region20: #{tpu_custom_call.1} parent=15 // pred_fallthru
          _
      $region16: #{tpu_custom_call.1} parent=5 // pred_fallthru
        _
      %p104 = scmp.le.s32.totalorder 1, %s10
      %p105 = scmp.lt.s32.totalorder %s10, 5
      %p106 = pnand %p104, %p105
      %p107 = pneg %p106
      // Predicated region
      $region21: #{tpu_custom_call.1} parent=5 // pred_check
        _
      $region22: #{tpu_custom_call.1} parent=5 // pred_check_branch
        %109 = sbr.rel (%p106) target = $region24
      $region23: #{tpu_custom_call.1} parent=5 // pred_region
        %s110 = ssub.s32 %s10, 1
        %s111 = sand.u32 %s23, 1
        %s112 = scalar_lea.sflag [#allocation5], %s111
        %s113 = sand.u32 %s23, 1
        %s114 = smul.addr %s113, 32
        %s115 = scalar_lea.vmem [#allocation4], %s114
        // Predicated region
        $region25: #{tpu_custom_call.1} parent=23 // pred_check
          %p116 = pneg %p36
        $region26: #{tpu_custom_call.1} parent=23 // pred_check_branch
          %118 = sbr.rel (%p116) target = $region28
        $region27: #{tpu_custom_call.1} parent=23 // pred_region
          %120 = dma.done %s112, 512
        $region28: #{tpu_custom_call.1} parent=23 // pred_fallthru
          _
        %s121 = sand.u32 %s23, 1
        %s122 = scalar_lea.sflag [#allocation5], %s121
        %s123 = sand.u32 %s23, 1
        %s124 = smul.addr %s123, 32
        %s125 = scalar_lea.vmem [#allocation4], %s124
        %p126 = pneg %p36
        %p127 = pneg %p33
        %p128 = pneg %p62
        %p129 = pneg %p59
        %s130 = smul.u32 2, %s15
        %p131 = scmp.lt.s32.totalorder %s130, 7
        %s132 = scalar_select %p131, %s130, 7
        %s133 = smul.addr %s132, 2
        %s134 = smul.addr %s133, 8
        %s135 = scalar_lea.vmem %s1, %s134
        %s136 = smul.u32 2, %s15
        %s137 = smul.u32 2, %s15
        %p138 = scmp.lt.s32.totalorder %s137, 7
        %s139 = scalar_select %p138, %s137, 7
        %s140 = smul.addr %s139, 2
        %s141 = smul.addr %s140, 8
        %s142 = scalar_lea.vmem %s1, %s141
        %s143 = smul.u32 2, %s15
        %vm144 = vcmask 122880
        %145 = vst.msk [vmem:[#allocation2 + $0x7] sm:$0x1] %vm144, -inf
        %146 = vst.msk [vmem:[#allocation2 + $0x27] sm:$0x1] %vm144, -inf
        %147 = vst.msk [vmem:[#allocation2 + $0x18] sm:$0x1] %vm144, -inf
        %148 = vst.msk [vmem:[#allocation2 + $0x38] sm:$0x1] %vm144, -inf
        %v149 = vld [vmem:[%s115] sm:$0xff]
        %v150 = vld [vmem:[%s115 + $0x8] sm:$0xff]
        %v151 = vld [vmem:[%s115 + $0x10] sm:$0xff]
        %v152 = vld [vmem:[%s115 + $0x18] sm:$0xff]
        %vm153 = vcmask 130048
        %154 = vst.msk [vmem:[#allocation2 + $0x8] sm:$0xff] %vm153, %v149
        %155 = vst.msk [vmem:[#allocation2 + $0x10] sm:$0xff] %vm153, %v150
        %156 = vst.msk [vmem:[#allocation2 + $0x28] sm:$0xff] %vm153, %v151
        %157 = vst.msk [vmem:[#allocation2 + $0x30] sm:$0xff] %vm153, %v152
        %s158 = scalar_lea.vmem [#allocation2], 7
        %v159 = vld [vmem:[%s158] ss:$2 sm:$0xff]
        %s160 = scalar_lea.vmem [#allocation2], 23
        %v161 = vld [vmem:[%s160] ss:$2 sm:$0x1]
        %s162 = scalar_lea.vmem [#allocation2], 39
        %v163 = vld [vmem:[%s162] ss:$2 sm:$0xff]
        %s164 = scalar_lea.vmem [#allocation2], 55
        %v165 = vld [vmem:[%s164] ss:$2 sm:$0x1]
        %s166 = scalar_lea.vmem [#allocation2], 8
        %v167 = vld [vmem:[%s166] ss:$2 sm:$0xff]
        %s168 = scalar_lea.vmem [#allocation2], 24
        %v169 = vld [vmem:[%s168] ss:$2 sm:$0x1]
        %s170 = scalar_lea.vmem [#allocation2], 40
        %v171 = vld [vmem:[%s170] ss:$2 sm:$0xff]
        %s172 = scalar_lea.vmem [#allocation2], 56
        %v173 = vld [vmem:[%s172] ss:$2 sm:$0x1]
        %v174 = vmax.f32 %v159, %v167
        %v175 = vmax.f32 %v161, %v169
        %v176 = vmax.f32 %v163, %v171
        %v177 = vmax.f32 %v165, %v173
        %vm178 = vcmask 65536
        %179 = vst.msk [vmem:[#allocation3 + $0x7] sm:$0x1] %vm178, -inf
        %180 = vst.msk [vmem:[#allocation3 + $0x27] sm:$0x1] %vm178, -inf
        %181 = vst.msk [vmem:[#allocation3 + $0x18] sm:$0x1] %vm178, -inf
        %182 = vst.msk [vmem:[#allocation3 + $0x38] sm:$0x1] %vm178, -inf
        %183 = vxpose.xlu0.b32.start [1/16] %v174, 128
        %184 = vxpose.xlu0.b32.cont [2/16] %v175, 128
        %185 = vxpose.xlu0.b32.cont [3/16] 0.0, 128
        %186 = vxpose.xlu0.b32.cont [4/16] 0.0, 128
        %187 = vxpose.xlu0.b32.cont [5/16] 0.0, 128
        %188 = vxpose.xlu0.b32.cont [6/16] 0.0, 128
        %189 = vxpose.xlu0.b32.cont [7/16] 0.0, 128
        %190 = vxpose.xlu0.b32.cont [8/16] 0.0, 128
        %191 = vxpose.xlu0.b32.cont [9/16] 0.0, 128
        %192 = vxpose.xlu0.b32.cont [10/16] 0.0, 128
        %193 = vxpose.xlu0.b32.cont [11/16] 0.0, 128
        %194 = vxpose.xlu0.b32.cont [12/16] 0.0, 128
        %195 = vxpose.xlu0.b32.cont [13/16] 0.0, 128
        %196 = vxpose.xlu0.b32.cont [14/16] 0.0, 128
        %197 = vxpose.xlu0.b32.cont [15/16] 0.0, 128
        %198 = vxpose.xlu0.b32.end [16/16] 0.0, 128
        %v199 = vpop.trf.xlu0
        %v200 = vpop.trf.xlu0
        %v201 = vpop.trf.xlu0
        %v202 = vpop.trf.xlu0
        %v203 = vpop.trf.xlu0
        %v204 = vpop.trf.xlu0
        %v205 = vpop.trf.xlu0
        %v206 = vpop.trf.xlu0
        %v207 = vpop.trf.xlu0
        %v208 = vpop.trf.xlu0
        %v209 = vpop.trf.xlu0
        %v210 = vpop.trf.xlu0
        %v211 = vpop.trf.xlu0
        %v212 = vpop.trf.xlu0
        %v213 = vpop.trf.xlu0
        %v214 = vpop.trf.xlu0
        %215 = vxpose.xlu0.b32.start [1/16] %v176, 128
        %216 = vxpose.xlu0.b32.cont [2/16] %v177, 128
        %217 = vxpose.xlu0.b32.cont [3/16] 0.0, 128
        %218 = vxpose.xlu0.b32.cont [4/16] 0.0, 128
        %219 = vxpose.xlu0.b32.cont [5/16] 0.0, 128
        %220 = vxpose.xlu0.b32.cont [6/16] 0.0, 128
        %221 = vxpose.xlu0.b32.cont [7/16] 0.0, 128
        %222 = vxpose.xlu0.b32.cont [8/16] 0.0, 128
        %223 = vxpose.xlu0.b32.cont [9/16] 0.0, 128
        %224 = vxpose.xlu0.b32.cont [10/16] 0.0, 128
        %225 = vxpose.xlu0.b32.cont [11/16] 0.0, 128
        %226 = vxpose.xlu0.b32.cont [12/16] 0.0, 128
        %227 = vxpose.xlu0.b32.cont [13/16] 0.0, 128
        %228 = vxpose.xlu0.b32.cont [14/16] 0.0, 128
        %229 = vxpose.xlu0.b32.cont [15/16] 0.0, 128
        %230 = vxpose.xlu0.b32.end [16/16] 0.0, 128
        %v231 = vpop.trf.xlu0
        %v232 = vpop.trf.xlu0
        %v233 = vpop.trf.xlu0
        %v234 = vpop.trf.xlu0
        %v235 = vpop.trf.xlu0
        %v236 = vpop.trf.xlu0
        %v237 = vpop.trf.xlu0
        %v238 = vpop.trf.xlu0
        %v239 = vpop.trf.xlu0
        %v240 = vpop.trf.xlu0
        %v241 = vpop.trf.xlu0
        %v242 = vpop.trf.xlu0
        %v243 = vpop.trf.xlu0
        %v244 = vpop.trf.xlu0
        %v245 = vpop.trf.xlu0
        %v246 = vpop.trf.xlu0
        %vm247 = vcmask 72704
        %248 = vst.msk [vmem:[#allocation3 + $0x8] sm:$0xff] %vm247, %v199
        %249 = vst.msk [vmem:[#allocation3 + $0x10] sm:$0xff] %vm247, %v200
        %250 = vst.msk [vmem:[#allocation3 + $0x28] sm:$0xff] %vm247, %v231
        %251 = vst.msk [vmem:[#allocation3 + $0x30] sm:$0xff] %vm247, %v232
        %s252 = scalar_lea.vmem [#allocation3], 7
        %v253 = vld [vmem:[%s252] ss:$2 sm:$0xff]
        %s254 = scalar_lea.vmem [#allocation3], 23
        %v255 = vld [vmem:[%s254] ss:$2 sm:$0x1]
        %s256 = scalar_lea.vmem [#allocation3], 39
        %v257 = vld [vmem:[%s256] ss:$2 sm:$0xff]
        %s258 = scalar_lea.vmem [#allocation3], 55
        %v259 = vld [vmem:[%s258] ss:$2 sm:$0x1]
        %s260 = scalar_lea.vmem [#allocation3], 8
        %v261 = vld [vmem:[%s260] ss:$2 sm:$0xff]
        %s262 = scalar_lea.vmem [#allocation3], 24
        %v263 = vld [vmem:[%s262] ss:$2 sm:$0x1]
        %s264 = scalar_lea.vmem [#allocation3], 40
        %v265 = vld [vmem:[%s264] ss:$2 sm:$0xff]
        %s266 = scalar_lea.vmem [#allocation3], 56
        %v267 = vld [vmem:[%s266] ss:$2 sm:$0x1]
        %v268 = vmax.f32 %v253, %v261
        %v269 = vmax.f32 %v255, %v263
        %v270 = vmax.f32 %v257, %v265
        %v271 = vmax.f32 %v259, %v267
        %272 = vxpose.xlu0.b32.start [1/16] %v268, 128
        %273 = vxpose.xlu0.b32.cont [2/16] %v269, 128
        %274 = vxpose.xlu0.b32.cont [3/16] 0.0, 128
        %275 = vxpose.xlu0.b32.cont [4/16] 0.0, 128
        %276 = vxpose.xlu0.b32.cont [5/16] 0.0, 128
        %277 = vxpose.xlu0.b32.cont [6/16] 0.0, 128
        %278 = vxpose.xlu0.b32.cont [7/16] 0.0, 128
        %279 = vxpose.xlu0.b32.cont [8/16] 0.0, 128
        %280 = vxpose.xlu0.b32.cont [9/16] 0.0, 128
        %281 = vxpose.xlu0.b32.cont [10/16] 0.0, 128
        %282 = vxpose.xlu0.b32.cont [11/16] 0.0, 128
        %283 = vxpose.xlu0.b32.cont [12/16] 0.0, 128
        %284 = vxpose.xlu0.b32.cont [13/16] 0.0, 128
        %285 = vxpose.xlu0.b32.cont [14/16] 0.0, 128
        %286 = vxpose.xlu0.b32.cont [15/16] 0.0, 128
        %287 = vxpose.xlu0.b32.end [16/16] 0.0, 128
        %v288 = vpop.trf.xlu0
        %v289 = vpop.trf.xlu0
        %v290 = vpop.trf.xlu0
        %v291 = vpop.trf.xlu0
        %v292 = vpop.trf.xlu0
        %v293 = vpop.trf.xlu0
        %v294 = vpop.trf.xlu0
        %v295 = vpop.trf.xlu0
        %v296 = vpop.trf.xlu0
        %v297 = vpop.trf.xlu0
        %v298 = vpop.trf.xlu0
        %v299 = vpop.trf.xlu0
        %v300 = vpop.trf.xlu0
        %v301 = vpop.trf.xlu0
        %v302 = vpop.trf.xlu0
        %v303 = vpop.trf.xlu0
        %304 = vxpose.xlu0.b32.start [1/16] %v270, 128
        %305 = vxpose.xlu0.b32.cont [2/16] %v271, 128
        %306 = vxpose.xlu0.b32.cont [3/16] 0.0, 128
        %307 = vxpose.xlu0.b32.cont [4/16] 0.0, 128
        %308 = vxpose.xlu0.b32.cont [5/16] 0.0, 128
        %309 = vxpose.xlu0.b32.cont [6/16] 0.0, 128
        %310 = vxpose.xlu0.b32.cont [7/16] 0.0, 128
        %311 = vxpose.xlu0.b32.cont [8/16] 0.0, 128
        %312 = vxpose.xlu0.b32.cont [9/16] 0.0, 128
        %313 = vxpose.xlu0.b32.cont [10/16] 0.0, 128
        %314 = vxpose.xlu0.b32.cont [11/16] 0.0, 128
        %315 = vxpose.xlu0.b32.cont [12/16] 0.0, 128
        %316 = vxpose.xlu0.b32.cont [13/16] 0.0, 128
        %317 = vxpose.xlu0.b32.cont [14/16] 0.0, 128
        %318 = vxpose.xlu0.b32.cont [15/16] 0.0, 128
        %319 = vxpose.xlu0.b32.end [16/16] 0.0, 128
        %v320 = vpop.trf.xlu0
        %v321 = vpop.trf.xlu0
        %v322 = vpop.trf.xlu0
        %v323 = vpop.trf.xlu0
        %v324 = vpop.trf.xlu0
        %v325 = vpop.trf.xlu0
        %v326 = vpop.trf.xlu0
        %v327 = vpop.trf.xlu0
        %v328 = vpop.trf.xlu0
        %v329 = vpop.trf.xlu0
        %v330 = vpop.trf.xlu0
        %v331 = vpop.trf.xlu0
        %v332 = vpop.trf.xlu0
        %v333 = vpop.trf.xlu0
        %v334 = vpop.trf.xlu0
        %v335 = vpop.trf.xlu0
        %336 = vst.msk [vmem:[%s142] sm:$0xff] %vm247, %v288
        %337 = vst.msk [vmem:[%s142 + $0x8] sm:$0x1] %vm178, %v289
        %338 = vst.msk [vmem:[%s142 + $0x10] sm:$0xff] %vm247, %v320
        %339 = vst.msk [vmem:[%s142 + $0x18] sm:$0x1] %vm178, %v321
        %s340 = smul.u32 2, %s15
        %p341 = scmp.lt.s32.totalorder %s340, 7
        %s342 = scalar_select %p341, %s340, 7
        %s343 = smul.addr %s342, 2
        %s344 = smul.addr %s343, 8
        %s345 = scalar_lea.vmem %s1, %s344
        // Predicated region
        $region29: #{tpu_custom_call.1} parent=23 // pred_check
          %p346 = pneg %p59
        $region30: #{tpu_custom_call.1} parent=23 // pred_check_branch
          %348 = sbr.rel (%p346) target = $region32
        $region31: #{tpu_custom_call.1} parent=23 // pred_region
          %s349 = smul.u32 2, %s15
        $region32: #{tpu_custom_call.1} parent=23 // pred_fallthru
          _
      $region24: #{tpu_custom_call.1} parent=5 // pred_fallthru
        _
      %p350 = scmp.le.s32.totalorder 2, %s10
      // Predicated region
      $region33: #{tpu_custom_call.1} parent=5 // pred_check
        %p351 = pneg %p350
      $region34: #{tpu_custom_call.1} parent=5 // pred_check_branch
        %353 = sbr.rel (%p351) target = $region36
      $region35: #{tpu_custom_call.1} parent=5 // pred_region
        %s354 = ssub.s32 %s10, 2
        // Predicated region
        $region37: #{tpu_custom_call.1} parent=35 // pred_check
          %p355 = pneg %p65
        $region38: #{tpu_custom_call.1} parent=35 // pred_check_branch
          %357 = sbr.rel (%p355) target = $region40
        $region39: #{tpu_custom_call.1} parent=35 // pred_region
          %s358 = smul.u32 2, %s16
          %p359 = scmp.lt.s32.totalorder %s358, 7
          %s360 = scalar_select %p359, %s358, 7
          %s361 = smul.addr %s360, 2
          %s362 = smul.addr %s361, 8
          %s363 = scalar_lea.vmem %s1, %s362
        $region40: #{tpu_custom_call.1} parent=35 // pred_fallthru
          _
      $region36: #{tpu_custom_call.1} parent=5 // pred_fallthru
        _
    $region6: #{tpu_custom_call.1} parent=1 // loop_footer
      %s14 = sadd.s32 1, %s10
    $region7: #{tpu_custom_call.1} parent=1 // loop_footer_branch
      %9 = sbr.rel target = $region3
    $region8: #{tpu_custom_call.1} parent=1 // loop_exit
      _
    %364 = vsyncpa [#allocation5], 1
    %s365 = scalar_lea.sflag [#allocation5], 1
    %366 = vsyncpa %s365, 1

</llo_original>
